<compile_context>
chip_gen: v7x
topology: tpu7x:2x2x1
jax: 0.10.0
libtpu: 0.0.40
codegen_flags: <defaults>
</compile_context>

<pallas_src>
import functools

import jax
import jax.numpy as jnp
from jax.experimental import pallas as pl
from jax.experimental.pallas import tpu as pltpu

# ---------------- deterministic config (mirrors depthnet_config / __init__) ----
DEPTH_MIN = 1e-3
DEPTH_MAX = 60.0
NUM_BINS = 16            # num_depth_bins -> logits have NUM_BINS + 1 channels
STRIDE = 16
ALPHA = 0.25
GAMMA = 2.0              # fixed; lowered as w*w (no jnp.power)
FG_WEIGHT = 13.0
BG_WEIGHT = 1.0
ONE_HOT_EPS = 1e-6       # kornia one_hot eps
SOFTMAX_EPS = 1e-8       # kornia focal_loss eps

TN_MAX = 2048            # max pixels (lanes) per grid step


# ---------------------------- Pallas kernel -----------------------------------
def _ddn_loss_kernel(hw, logits_ref, side_ref, out_ref):
    """One (C, TN) tile of pixels for one batch image.

    logits_ref: (1, C, TN)  depth logits (classes on sublanes, pixels on lanes)
    side_ref:   (1, 2, TN)  row 0 = target depth map, row 1 = fg mask (0/1)
    out_ref:    (1, 1, TN)  per-lane weighted-loss accumulator (resident over j)
    """
    j = pl.program_id(1)

    @pl.when(j == 0)
    def _():
        out_ref[...] = jnp.zeros_like(out_ref)

    tn = logits_ref.shape[2]
    logits = logits_ref[0].astype(jnp.float32)       # (C, TN); bf16 inputs upcast here
    side = side_ref[0]                               # (2, TN)
    depth = side[0:1, :]                             # (1, TN)
    fg = side[1:2, :]                                # (1, TN)

    # --- bin_depths, mode='LID', target=True ---
    bin_size = 2.0 * (DEPTH_MAX - DEPTH_MIN) / (NUM_BINS * (1 + NUM_BINS))
    ind = -0.5 + 0.5 * jnp.sqrt(1.0 + 8.0 * (depth - DEPTH_MIN) / bin_size)
    bad = (ind < 0.0) | (ind > NUM_BINS) | (~jnp.isfinite(ind))
    ind = jnp.where(bad, jnp.float32(NUM_BINS), ind)
    target = ind.astype(jnp.int32)                   # truncation == floor for >= 0

    # --- focal loss (kornia-style, reduction='none'), softmax over class axis ---
    m = jnp.max(logits, axis=0, keepdims=True)       # (1, TN)
    z = logits - m
    e = jnp.exp(z)                                   # C exps / pixel (EUP)
    se = jnp.sum(e, axis=0, keepdims=True)           # (1, TN)
    # approx reciprocal + log-softmax: accepted precision trade (diverges from
    # kornia's log(softmax+1e-8) only for probabilities below ~1e-8).
    p = e * pl.reciprocal(se, approx=True) + SOFTMAX_EPS
    logp = z - jnp.log(se)                           # 1 log / pixel
    cls = jax.lax.broadcasted_iota(jnp.int32, logits.shape, 0)
    onehot = (cls == target).astype(jnp.float32) + ONE_HOT_EPS
    w = 1.0 - p
    focal = (-ALPHA) * (w * w) * logp                # gamma=2 -> w*w
    loss_px = jnp.sum(onehot * focal, axis=0, keepdims=True)   # (1, TN)

    # --- Balancer weights + in-kernel validity mask for padded lanes ---
    col = j * tn + jax.lax.broadcasted_iota(jnp.int32, (1, tn), 1)
    weight = fg * (FG_WEIGHT - BG_WEIGHT) + BG_WEIGHT
    weight = jnp.where(col < hw, weight, 0.0)

    out_ref[...] += (loss_px * weight).reshape(out_ref.shape)


def _pick_tile(hw, tn_max=TN_MAX):
    """Largest lane tile (multiple of 128, <= tn_max); avoid padding if possible."""
    if hw % 128 == 0:
        k = hw // 128
        for d in range(min(k, tn_max // 128), 0, -1):
            if k % d == 0:
                return 128 * d, hw                   # divides exactly -> no pad
    tn = min(tn_max, ((hw + 127) // 128) * 128)
    hwp = ((hw + tn - 1) // tn) * tn
    return tn, hwp


def _ddn_loss_pallas(logits_r, side, hw, tn):
    b, c, hwp = logits_r.shape
    grid = (b, hwp // tn)

    cost = pl.CostEstimate(
        flops=int(b * hwp * (12 * c + 32)),
        transcendentals=int(b * hwp * (c + 3)),
        bytes_accessed=int(logits_r.size * logits_r.dtype.itemsize
                           + side.size * side.dtype.itemsize
                           + b * tn * 4),
    )

    # TODO(synk): on v7x consider pipeline_mode=pl.Buffered(3) on the logits
    # BlockSpec; the batch axis marked "parallel" already enables 2-TC sharding.
    out = pl.pallas_call(
        functools.partial(_ddn_loss_kernel, hw),
        out_shape=jax.ShapeDtypeStruct((b, 1, tn), jnp.float32),
        grid_spec=pltpu.PrefetchScalarGridSpec(
            num_scalar_prefetch=0,
            grid=grid,
            in_specs=[
                pl.BlockSpec((1, c, tn), lambda bi, ji: (bi, 0, ji)),
                pl.BlockSpec((1, 2, tn), lambda bi, ji: (bi, 0, ji)),
            ],
            out_specs=pl.BlockSpec((1, 1, tn), lambda bi, ji: (bi, 0, 0)),
        ),
        compiler_params=pltpu.CompilerParams(
            dimension_semantics=("parallel", "arbitrary")),
        cost_estimate=cost,
    )(logits_r, side)
    return out


# ---------------------------- JAX glue -----------------------------------------
def build_target_depth_argo(gt_boxes2d, gt_center_depth, B, H, W):
    """Equivalent of build_target_depth_from_3dcenter_argo (last box wins)."""
    depth_maps = jnp.zeros((B, H, W), jnp.float32)
    fg_mask = jnp.zeros((B, H, W), jnp.bool_)
    vv = jnp.arange(H)[:, None]
    uu = jnp.arange(W)[None, :]
    for b in range(B):
        boxes = gt_boxes2d[b]
        depths = gt_center_depth[b]
        if boxes.shape[0] == 0:
            continue
        boxes = boxes / STRIDE
        u1 = jnp.floor(boxes[:, 0]).astype(jnp.int32)
        v1 = jnp.floor(boxes[:, 1]).astype(jnp.int32)
        u2 = jnp.ceil(boxes[:, 2]).astype(jnp.int32)
        v2 = jnp.ceil(boxes[:, 3]).astype(jnp.int32)
        dm = depth_maps[b]
        fm = fg_mask[b]
        for n in range(boxes.shape[0]):
            inbox = (vv >= v1[n]) & (vv < v2[n]) & (uu >= u1[n]) & (uu < u2[n])
            dm = jnp.where(inbox, depths[n].astype(jnp.float32), dm)
            fm = fm | inbox
        depth_maps = depth_maps.at[b].set(dm)
        fg_mask = fg_mask.at[b].set(fm)
    return depth_maps, fg_mask


def ddn_loss(depth_logits, gt_boxes2d, gt_center_depth):
    """Forward pass of DDNLoss (type='argo', gt_depths=None).

    depth_logits: (B, D+1, H, W) float32 or bfloat16, NCHW as in PyTorch.
    gt_boxes2d:   list of B arrays, each (N_b, 4) in image pixel coords.
    gt_center_depth: list of B arrays, each (N_b,).
    Returns a scalar loss.
    """
    B, C, H, W = depth_logits.shape
    depth_maps, fg_mask = build_target_depth_argo(gt_boxes2d, gt_center_depth, B, H, W)

    hw = H * W
    logits_r = depth_logits.reshape(B, C, hw)          # native NCHW; free reshape
    side = jnp.stack([depth_maps.reshape(B, hw).astype(jnp.float32),
                      fg_mask.reshape(B, hw).astype(jnp.float32)], axis=1)  # (B,2,hw)

    tn, hwp = _pick_tile(hw)
    if hwp != hw:                                       # only when hw has no nice tile
        pad = hwp - hw
        logits_r = jnp.pad(logits_r, ((0, 0), (0, 0), (0, pad)))
        side = jnp.pad(side, ((0, 0), (0, 0), (0, pad)))

    partial = _ddn_loss_pallas(logits_r, side, hw, tn)  # (B, 1, tn) per-lane sums
    # Balancer: fg_loss + bg_loss == sum(weights*loss) / num_pixels, num_pixels = B*H*W
    return jnp.sum(partial) / jnp.float32(B * hw)


# ---------------------------- demo ---------------------------------------------
if __name__ == "__main__":
    B, H, W = 2, 16, 16
    C = NUM_BINS + 1
    N_BOXES = 3
    IMG_H, IMG_W = H * STRIDE, W * STRIDE

    key = jax.random.PRNGKey(0)
    k_logits, k_boxes = jax.random.split(key, 2)
    depth_logits = jax.random.normal(k_logits, (B, C, H, W), jnp.float32)

    gt_boxes2d = []
    gt_center_depth = []
    for b in range(B):
        kb = jax.random.fold_in(k_boxes, b)
        kc, ks, kd = jax.random.split(kb, 3)
        centers = jax.random.uniform(kc, (N_BOXES, 2), minval=48.0, maxval=208.0)
        sizes = jax.random.uniform(ks, (N_BOXES, 2), minval=24.0, maxval=96.0)
        boxes = jnp.concatenate([centers - sizes / 2.0, centers + sizes / 2.0], axis=1)
        boxes = jnp.clip(boxes, 0.0, float(max(IMG_H, IMG_W)))
        gt_boxes2d.append(boxes.astype(jnp.float32))
        gt_center_depth.append(
            jax.random.uniform(kd, (N_BOXES,), minval=2.0, maxval=55.0).astype(jnp.float32))

    loss = ddn_loss(depth_logits, gt_boxes2d, gt_center_depth)
    jax.block_until_ready(loss)
    assert loss.shape == () and jnp.isfinite(loss)
    print("KERNEL_OK")
</pallas_src>

<mosaic_0001>
module attributes {stable_mosaic.version = 11 : i64} {
  func.func @_ddn_loss_kernel(%arg0: i32, %arg1: i32, %arg2: memref<1x17x256xf32, #tpu.memory_space<vmem>>, %arg3: memref<1x2x256xf32, #tpu.memory_space<vmem>>, %arg4: memref<1x1x256xf32, #tpu.memory_space<vmem>>) attributes {dimension_semantics = [#tpu.dimension_semantics<parallel>, #tpu.dimension_semantics<arbitrary>], iteration_bounds = array<i64: 2, 1>, scalar_prefetch = 0 : i64, scratch_operands = 0 : i64, tpu.core_type = #tpu.core_type<tc>, window_params = [{transform_indices = @transform_0, window_bounds = array<i64: 1, 17, 256>}, {transform_indices = @transform_1, window_bounds = array<i64: 1, 2, 256>}, {transform_indices = @transform_2, window_bounds = array<i64: 1, 1, 256>}]} {
    %c0_i32 = arith.constant 0 : i32
    %0 = arith.cmpi eq, %arg1, %c0_i32 : i32
    %1 = arith.extui %0 : i1 to i32
    %c0_i32_0 = arith.constant 0 : i32
    %2 = arith.cmpi ne, %1, %c0_i32_0 : i32
    scf.if %2 {
      %cst_33 = arith.constant 0.000000e+00 : f32
      %82 = vector.broadcast %cst_33 : f32 to vector<1x1x256xf32>
      %c0_34 = arith.constant 0 : index
      %c0_35 = arith.constant 0 : index
      %c0_36 = arith.constant 0 : index
      %83 = vector.load %arg4[%c0_34, %c0_35, %c0_36] : memref<1x1x256xf32, #tpu.memory_space<vmem>>, vector<1x1x256xf32>
      tpu.vector_store %arg4[%c0_34, %c0_35, %c0_36], %82 {strides = array<i32>} : memref<1x1x256xf32, #tpu.memory_space<vmem>>, vector<1x1x256xf32>,
    } else {
    }
    %c0 = arith.constant 0 : index
    %c0_1 = arith.constant 0 : index
    %c0_2 = arith.constant 0 : index
    %3 = vector.load %arg2[%c0, %c0_1, %c0_2] : memref<1x17x256xf32, #tpu.memory_space<vmem>>, vector<1x17x256xf32>
    %4 = vector.shape_cast %3 : vector<1x17x256xf32> to vector<17x256xf32>
    %c0_3 = arith.constant 0 : index
    %c0_4 = arith.constant 0 : index
    %c0_5 = arith.constant 0 : index
    %5 = vector.load %arg3[%c0_3, %c0_4, %c0_5] : memref<1x2x256xf32, #tpu.memory_space<vmem>>, vector<1x2x256xf32>
    %6 = vector.shape_cast %5 : vector<1x2x256xf32> to vector<2x256xf32>
    %7 = vector.extract_strided_slice %6 {offsets = [0, 0], sizes = [1, 256], strides = [1, 1]} : vector<2x256xf32> to vector<1x256xf32>
    %8 = vector.extract_strided_slice %6 {offsets = [1, 0], sizes = [1, 256], strides = [1, 1]} : vector<2x256xf32> to vector<1x256xf32>
    %cst = arith.constant 1.000000e-03 : f32
    %9 = vector.broadcast %cst : f32 to vector<1x256xf32>
    %10 = arith.subf %7, %9 : vector<1x256xf32>
    %cst_6 = arith.constant 8.000000e+00 : f32
    %11 = vector.broadcast %cst_6 : f32 to vector<1x256xf32>
    %12 = arith.mulf %11, %10 : vector<1x256xf32>
    %cst_7 = arith.constant 0.441169113 : f32
    %13 = vector.broadcast %cst_7 : f32 to vector<1x256xf32>
    %14 = arith.divf %12, %13 : vector<1x256xf32>
    %cst_8 = arith.constant 1.000000e+00 : f32
    %15 = vector.broadcast %cst_8 : f32 to vector<1x256xf32>
    %16 = arith.addf %15, %14 : vector<1x256xf32>
    %17 = math.sqrt %16 : vector<1x256xf32>
    %cst_9 = arith.constant 5.000000e-01 : f32
    %18 = vector.broadcast %cst_9 : f32 to vector<1x256xf32>
    %19 = arith.mulf %18, %17 : vector<1x256xf32>
    %cst_10 = arith.constant -5.000000e-01 : f32
    %20 = vector.broadcast %cst_10 : f32 to vector<1x256xf32>
    %21 = arith.addf %20, %19 : vector<1x256xf32>
    %cst_11 = arith.constant 0.000000e+00 : f32
    %22 = vector.broadcast %cst_11 : f32 to vector<1x256xf32>
    %23 = arith.cmpf olt, %21, %22 : vector<1x256xf32>
    %cst_12 = arith.constant 1.600000e+01 : f32
    %24 = vector.broadcast %cst_12 : f32 to vector<1x256xf32>
    %25 = arith.cmpf ogt, %21, %24 : vector<1x256xf32>
    %26 = arith.ori %23, %25 : vector<1x256xi1>
    %27 = tpu.weird %21 : vector<1x256xf32> -> vector<1x256xi1>
    %cst_13 = arith.constant dense<true> : vector<1x256xi1>
    %28 = arith.xori %27, %cst_13 : vector<1x256xi1>
    %cst_14 = arith.constant dense<true> : vector<1x256xi1>
    %29 = arith.xori %28, %cst_14 : vector<1x256xi1>
    %30 = arith.ori %26, %29 : vector<1x256xi1>
    %cst_15 = arith.constant 1.600000e+01 : f32
    %31 = vector.broadcast %cst_15 : f32 to vector<1x256xf32>
    %32 = arith.select %30, %31, %21 : vector<1x256xi1>, vector<1x256xf32>
    %33 = arith.fptosi %32 : vector<1x256xf32> to vector<1x256xi32>
    %cst_16 = arith.constant dense<0xFF800000> : vector<256xf32>
    %34 = vector.multi_reduction <maximumf>, %4, %cst_16 [0] : vector<17x256xf32> to vector<256xf32>
    %35 = vector.shape_cast %34 : vector<256xf32> to vector<1x256xf32>
    %36 = vector.broadcast %35 : vector<1x256xf32> to vector<17x256xf32>
    %37 = arith.subf %4, %36 : vector<17x256xf32>
    %38 = math.exp %37 : vector<17x256xf32>
    %cst_17 = arith.constant dense<0.000000e+00> : vector<256xf32>
    %39 = vector.multi_reduction <add>, %38, %cst_17 [0] : vector<17x256xf32> to vector<256xf32>
    %40 = vector.shape_cast %39 : vector<256xf32> to vector<1x256xf32>
    %41 = tpu.reciprocal %40 {approx = true} : vector<1x256xf32> -> vector<1x256xf32>
    %42 = vector.broadcast %41 : vector<1x256xf32> to vector<17x256xf32>
    %43 = arith.mulf %38, %42 : vector<17x256xf32>
    %cst_18 = arith.constant 9.99999993E-9 : f32
    %44 = vector.broadcast %cst_18 : f32 to vector<17x256xf32>
    %45 = arith.addf %43, %44 : vector<17x256xf32>
    %46 = math.log %40 : vector<1x256xf32>
    %47 = vector.broadcast %46 : vector<1x256xf32> to vector<17x256xf32>
    %48 = arith.subf %37, %47 : vector<17x256xf32>
    %49 = tpu.iota {dimensions = array<i32: 0>} : vector<17x256xi32>
    %50 = vector.broadcast %33 : vector<1x256xi32> to vector<17x256xi32>
    %51 = arith.cmpi eq, %49, %50 : vector<17x256xi32>
    %52 = arith.extui %51 : vector<17x256xi1> to vector<17x256xi32>
    %53 = arith.sitofp %52 : vector<17x256xi32> to vector<17x256xf32>
    %cst_19 = arith.constant 9.99999997E-7 : f32
    %54 = vector.broadcast %cst_19 : f32 to vector<17x256xf32>
    %55 = arith.addf %53, %54 : vector<17x256xf32>
    %cst_20 = arith.constant 1.000000e+00 : f32
    %56 = vector.broadcast %cst_20 : f32 to vector<17x256xf32>
    %57 = arith.subf %56, %45 : vector<17x256xf32>
    %58 = arith.mulf %57, %57 : vector<17x256xf32>
    %cst_21 = arith.constant -2.500000e-01 : f32
    %59 = vector.broadcast %cst_21 : f32 to vector<17x256xf32>
    %60 = arith.mulf %59, %58 : vector<17x256xf32>
    %61 = arith.mulf %60, %48 : vector<17x256xf32>
    %62 = arith.mulf %55, %61 : vector<17x256xf32>
    %cst_22 = arith.constant dense<0.000000e+00> : vector<256xf32>
    %63 = vector.multi_reduction <add>, %62, %cst_22 [0] : vector<17x256xf32> to vector<256xf32>
    %64 = vector.shape_cast %63 : vector<256xf32> to vector<1x256xf32>
    %c256_i32 = arith.constant 256 : i32
    %65 = arith.muli %arg1, %c256_i32 : i32
    %66 = tpu.iota {dimensions = array<i32: 1>} : vector<1x256xi32>
    %67 = vector.broadcast %65 : i32 to vector<1x256xi32>
    %68 = arith.addi %67, %66 : vector<1x256xi32>
    %cst_23 = arith.constant 1.200000e+01 : f32
    %69 = vector.broadcast %cst_23 : f32 to vector<1x256xf32>
    %70 = arith.mulf %8, %69 : vector<1x256xf32>
    %cst_24 = arith.constant 1.000000e+00 : f32
    %71 = vector.broadcast %cst_24 : f32 to vector<1x256xf32>
    %72 = arith.addf %70, %71 : vector<1x256xf32>
    %c256_i32_25 = arith.constant 256 : i32
    %73 = vector.broadcast %c256_i32_25 : i32 to vector<1x256xi32>
    %74 = arith.cmpi slt, %68, %73 : vector<1x256xi32>
    %cst_26 = arith.constant 0.000000e+00 : f32
    %75 = vector.broadcast %cst_26 : f32 to vector<1x256xf32>
    %76 = arith.select %74, %72, %75 : vector<1x256xi1>, vector<1x256xf32>
    %c0_27 = arith.constant 0 : index
    %c0_28 = arith.constant 0 : index
    %c0_29 = arith.constant 0 : index
    %77 = vector.load %arg4[%c0_27, %c0_28, %c0_29] : memref<1x1x256xf32, #tpu.memory_space<vmem>>, vector<1x1x256xf32>
    %78 = arith.mulf %64, %76 : vector<1x256xf32>
    %79 = vector.shape_cast %78 : vector<1x256xf32> to vector<1x1x256xf32>
    %80 = arith.addf %77, %79 : vector<1x1x256xf32>
    %c0_30 = arith.constant 0 : index
    %c0_31 = arith.constant 0 : index
    %c0_32 = arith.constant 0 : index
    %81 = vector.load %arg4[%c0_30, %c0_31, %c0_32] : memref<1x1x256xf32, #tpu.memory_space<vmem>>, vector<1x1x256xf32>
    tpu.vector_store %arg4[%c0_30, %c0_31, %c0_32], %80 {strides = array<i32>} : memref<1x1x256xf32, #tpu.memory_space<vmem>>, vector<1x1x256xf32>,
    return
  }
  func.func @transform_0(%arg0: i32, %arg1: i32) -> (i32, i32, i32) {
    %c0_i32 = arith.constant 0 : i32
    %c0_i32_0 = arith.constant 0 : i32
    return %arg0, %c0_i32, %arg1 : i32, i32, i32
  }
  func.func @transform_1(%arg0: i32, %arg1: i32) -> (i32, i32, i32) {
    %c0_i32 = arith.constant 0 : i32
    %c0_i32_0 = arith.constant 0 : i32
    return %arg0, %c0_i32, %arg1 : i32, i32, i32
  }
  func.func @transform_2(%arg0: i32, %arg1: i32) -> (i32, i32, i32) {
    %c0_i32 = arith.constant 0 : i32
    %c0_i32_0 = arith.constant 0 : i32
    %c0_i32_1 = arith.constant 0 : i32
    return %arg0, %c0_i32, %c0_i32_0 : i32, i32, i32
  }
}

</mosaic_0001>

<llo_original>
// kernel: tpu_custom_call.1
$region0: #{tpu_custom_call.1}
  #allocation0 [shape = 'u32[]', space=smem, size = 0x4, offset = 0x4, fixed_abs, tag = 'smem constant byte address 0x4 - core index']
  #allocation1 [shape = 'u32[144,128]{1,0:T(1,128)}', space=vmem, size = 0x12000, scoped, tag = 'internal scratch']
  %s0 = inlined_call_operand.vmem [shape: f32[2,17,256], index: 0, kind: input, shape index: {}]
  %s1 = inlined_call_operand.vmem [shape: f32[2,2,256], index: 1, kind: input, shape index: {}]
  %s2 = inlined_call_operand.hbm [shape: f32[2,1,256], index: 2, kind: output, shape index: {}]
  %s3 = sld [smem:[#allocation0]]
  $region45: #{tpu_custom_call.1} parent=0
    _
  %s5 = ssub.s32 1, %s3
  %s6 = scalar_select 0, %s5, %s3
  $region1: #{tpu_custom_call.1} parent=0
    #allocation2 [shape = 'u8[2048]{0}', space=vmem, size = 0x800, scoped, tag = 'output window, operand 0']
    #allocation3 [shape = 's32[2]{0}', space=sflag, size = 0x8, scoped, tag = 'scoped memory for tpu_custom_call.1']
    %7 = vsyncpa [#allocation3], 0
    %s8 = scalar_lea.sflag [#allocation3], 1
    %9 = vsyncpa %s8, 0
    loop: start=0, step=1, limit=4
    $region2: #{tpu_custom_call.1} parent=1 // loop_pre_header
      _
    $region3: #{tpu_custom_call.1} parent=1 // loop_header
      %s11 = sphi 0, %s15
      %p12 = scmp.ge.s32.totalorder %s11, 4
      %s18 = sphi 0, %s30
      %s19 = sphi 0, %s26
      %s20 = sphi 0, %s18
      %s21 = sphi 0, %s19
      %s22 = sphi 0, %s20
      %s23 = sphi 0, %s21
      %s35 = sphi 0, %s37
      %s38 = sphi 0, %s35
      %s39 = sphi 0, %s38
      %s55 = sphi 0, %s39
      %s63 = sphi 0, %s65
      %s66 = sphi 0, %s63
      %s67 = sphi 0, %s66
      %s83 = sphi 0, %s67
      %s89 = sphi 0, %s91
      %s92 = sphi 0, %s89
      %s93 = sphi 0, %s92
      %s109 = sphi 0, %s93
    $region4: #{tpu_custom_call.1} parent=1 // loop_header_branch
      %14 = sbr.rel (%p12) target = $region8
    $region5: #{tpu_custom_call.1} parent=1 // loop_body
      %s16 = ssub.s32 %s11, 1
      %s17 = ssub.s32 %s11, 2
      %s24 = sadd.s32 1, %s19
      %p25 = scmp.ge.s32.totalorder %s24, 1
      %s26 = scalar_select %p25, 0, %s24
      %s27 = sadd.s32 1, %s18
      %s28 = scalar_select %p25, %s27, %s18
      %p29 = scmp.ge.s32.totalorder %s28, 2
      %s30 = scalar_select %p29, 0, %s28
      %s31 = ssub.s32 %s18, %s30
      %s32 = ssub.s32 %s19, %s26
      %s33 = sor.u32 %s31, %s32
      %p34 = scmp.eq.s32.totalorder %s33, 0
      %s36 = sadd.s32 %s35, 1
      %s37 = scalar_select %p34, %s35, %s36
      %p40 = pneg %p34
      %p41 = scmp.eq.s32.totalorder %s11, 1
      %p42 = por %p40, %p41
      %p43 = scmp.ne.s32.totalorder %s35, %s38
      %p44 = scmp.eq.s32.totalorder %s11, 0
      %p45 = por %p43, %p44
      %p46 = scmp.ne.s32.totalorder %s35, %s38
      %p47 = scmp.eq.s32.totalorder %s16, 1
      %p48 = por %p46, %p47
      %p49 = scmp.ne.s32.totalorder %s38, %s39
      %p50 = scmp.eq.s32.totalorder %s16, 0
      %p51 = por %p49, %p50
      %p52 = scmp.ne.s32.totalorder %s38, %s39
      %p53 = scmp.eq.s32.totalorder %s17, 1
      %p54 = por %p52, %p53
      %p56 = scmp.ne.s32.totalorder %s39, %s55
      %p57 = scmp.eq.s32.totalorder %s17, 0
      %p58 = por %p56, %p57
      %s59 = ssub.s32 %s18, %s30
      %s60 = ssub.s32 %s19, %s26
      %s61 = sor.u32 %s59, %s60
      %p62 = scmp.eq.s32.totalorder %s61, 0
      %s64 = sadd.s32 %s63, 1
      %s65 = scalar_select %p62, %s63, %s64
      %p68 = pneg %p62
      %p69 = scmp.eq.s32.totalorder %s11, 1
      %p70 = por %p68, %p69
      %p71 = scmp.ne.s32.totalorder %s63, %s66
      %p72 = scmp.eq.s32.totalorder %s11, 0
      %p73 = por %p71, %p72
      %p74 = scmp.ne.s32.totalorder %s63, %s66
      %p75 = scmp.eq.s32.totalorder %s16, 1
      %p76 = por %p74, %p75
      %p77 = scmp.ne.s32.totalorder %s66, %s67
      %p78 = scmp.eq.s32.totalorder %s16, 0
      %p79 = por %p77, %p78
      %p80 = scmp.ne.s32.totalorder %s66, %s67
      %p81 = scmp.eq.s32.totalorder %s17, 1
      %p82 = por %p80, %p81
      %p84 = scmp.ne.s32.totalorder %s67, %s83
      %p85 = scmp.eq.s32.totalorder %s17, 0
      %p86 = por %p84, %p85
      %s87 = ssub.s32 %s18, %s30
      %p88 = scmp.eq.s32.totalorder %s87, 0
      %s90 = sadd.s32 %s89, 1
      %s91 = scalar_select %p88, %s89, %s90
      %p94 = pneg %p88
      %p95 = scmp.eq.s32.totalorder %s11, 1
      %p96 = por %p94, %p95
      %p97 = scmp.ne.s32.totalorder %s89, %s92
      %p98 = scmp.eq.s32.totalorder %s11, 0
      %p99 = por %p97, %p98
      %p100 = scmp.ne.s32.totalorder %s89, %s92
      %p101 = scmp.eq.s32.totalorder %s16, 1
      %p102 = por %p100, %p101
      %p103 = scmp.ne.s32.totalorder %s92, %s93
      %p104 = scmp.eq.s32.totalorder %s16, 0
      %p105 = por %p103, %p104
      %p106 = scmp.ne.s32.totalorder %s92, %s93
      %p107 = scmp.eq.s32.totalorder %s17, 1
      %p108 = por %p106, %p107
      %p110 = scmp.ne.s32.totalorder %s93, %s109
      %p111 = scmp.eq.s32.totalorder %s17, 0
      %p112 = por %p110, %p111
      %p113 = scmp.le.s32.totalorder 1, %s11
      %p114 = scmp.lt.s32.totalorder %s11, 3
      %p115 = pnand %p113, %p114
      %p116 = pneg %p115
      // Predicated region
      $region9: #{tpu_custom_call.1} parent=5 // pred_check
        _
      $region10: #{tpu_custom_call.1} parent=5 // pred_check_branch
        %118 = sbr.rel (%p115) target = $region12
      $region11: #{tpu_custom_call.1} parent=5 // pred_region
        %s119 = ssub.s32 %s11, 1
      $region12: #{tpu_custom_call.1} parent=5 // pred_fallthru
        _
      %p120 = scmp.lt.s32.totalorder %s11, 2
      // Predicated region
      $region13: #{tpu_custom_call.1} parent=5 // pred_check
        %p121 = pneg %p120
      $region14: #{tpu_custom_call.1} parent=5 // pred_check_branch
        %123 = sbr.rel (%p121) target = $region16
      $region15: #{tpu_custom_call.1} parent=5 // pred_region
        // Predicated region
        $region17: #{tpu_custom_call.1} parent=15 // pred_check
          %p124 = pneg %p45
        $region18: #{tpu_custom_call.1} parent=15 // pred_check_branch
          %126 = sbr.rel (%p124) target = $region20
        $region19: #{tpu_custom_call.1} parent=15 // pred_region
          %s127 = smul.u32 2, %s19
          %p128 = scmp.lt.s32.totalorder %s18, 1
          %s129 = scalar_select %p128, %s18, 1
          %p130 = scmp.lt.s32.totalorder %s127, 1
          %s131 = scalar_select %p130, %s127, 1
          %s132 = smul.addr %s129, 6
          %s133 = sadd.s32 %s131, %s132
          %s134 = smul.addr %s133, 8
          %s135 = scalar_lea.vmem %s0, %s134
          %s136 = smul.u32 2, %s19
        $region20: #{tpu_custom_call.1} parent=15 // pred_fallthru
          _
        // Predicated region
        $region21: #{tpu_custom_call.1} parent=15 // pred_check
          %p137 = pneg %p73
        $region22: #{tpu_custom_call.1} parent=15 // pred_check_branch
          %139 = sbr.rel (%p137) target = $region24
        $region23: #{tpu_custom_call.1} parent=15 // pred_region
          %s140 = smul.u32 2, %s19
          %p141 = scmp.lt.s32.totalorder %s18, 1
          %s142 = scalar_select %p141, %s18, 1
          %p143 = scmp.lt.s32.totalorder %s140, 1
          %s144 = scalar_select %p143, %s140, 1
          %s145 = smul.addr %s142, 2
          %s146 = sadd.s32 %s144, %s145
          %s147 = smul.addr %s146, 2
          %s148 = scalar_lea.vmem %s1, %s147
          %s149 = smul.u32 2, %s19
        $region24: #{tpu_custom_call.1} parent=15 // pred_fallthru
          _
      $region16: #{tpu_custom_call.1} parent=5 // pred_fallthru
        _
      %p150 = scmp.le.s32.totalorder 1, %s11
      %p151 = scmp.lt.s32.totalorder %s11, 3
      %p152 = pnand %p150, %p151
      %p153 = pneg %p152
      // Predicated region
      $region25: #{tpu_custom_call.1} parent=5 // pred_check
        _
      $region26: #{tpu_custom_call.1} parent=5 // pred_check_branch
        %155 = sbr.rel (%p152) target = $region28
      $region27: #{tpu_custom_call.1} parent=5 // pred_region
        %s156 = ssub.s32 %s11, 1
        %s157 = smul.u32 2, %s21
        %p158 = scmp.lt.s32.totalorder %s20, 1
        %s159 = scalar_select %p158, %s20, 1
        %p160 = scmp.lt.s32.totalorder %s157, 1
        %s161 = scalar_select %p160, %s157, 1
        %s162 = smul.addr %s159, 6
        %s163 = sadd.s32 %s161, %s162
        %s164 = smul.addr %s163, 8
        %s165 = scalar_lea.vmem %s0, %s164
        %p166 = pneg %p51
        %p167 = pneg %p48
        %s168 = smul.u32 2, %s21
        %p169 = scmp.lt.s32.totalorder %s20, 1
        %s170 = scalar_select %p169, %s20, 1
        %p171 = scmp.lt.s32.totalorder %s168, 1
        %s172 = scalar_select %p171, %s168, 1
        %s173 = smul.addr %s170, 2
        %s174 = sadd.s32 %s172, %s173
        %s175 = smul.addr %s174, 2
        %s176 = scalar_lea.vmem %s1, %s175
        %p177 = pneg %p79
        %p178 = pneg %p76
        %p179 = pneg %p105
        %p180 = pneg %p102
        %s181 = sand.u32 %s92, 1
        %s182 = scalar_lea.sflag [#allocation3], %s181
        %s183 = sand.u32 %s92, 1
        %s184 = smul.addr %s183, 2
        %s185 = scalar_lea.vmem [#allocation2], %s184
        %s186 = smul.u32 2, %s21
        %p187 = scmp.lt.s32.totalorder %s20, 1
        %s188 = scalar_select %p187, %s20, 1
        %p189 = scmp.lt.s32.totalorder %s186, 1
        %s190 = scalar_select %p189, %s186, 1
        %s191 = smul.addr %s188, 6
        %s192 = sadd.s32 %s190, %s191
        %s193 = smul.addr %s192, 8
        %s194 = scalar_lea.vmem %s0, %s193
        %s195 = smul.u32 2, %s21
        %s196 = smul.u32 2, %s21
        %p197 = scmp.lt.s32.totalorder %s20, 1
        %s198 = scalar_select %p197, %s20, 1
        %p199 = scmp.lt.s32.totalorder %s196, 1
        %s200 = scalar_select %p199, %s196, 1
        %s201 = smul.addr %s198, 2
        %s202 = sadd.s32 %s200, %s201
        %s203 = smul.addr %s202, 2
        %s204 = scalar_lea.vmem %s1, %s203
        %s205 = smul.u32 2, %s21
        %p206 = scmp.eq.s32.totalorder %s21, 0
        // Predicated region
        $region29: #{tpu_custom_call.1} parent=27 // pred_check
          %p207 = pneg %p206
        $region30: #{tpu_custom_call.1} parent=27 // pred_check_branch
          %209 = sbr.rel (%p207) target = $region32
        $region31: #{tpu_custom_call.1} parent=27 // pred_region
          %v210 = vlaneseq
          %vm211 = vcmp.ge.s32.totalorder %v210, 0
          %vm212 = vcmp.lt.s32.totalorder %v210, 256
          %vm213 = vmand %vm211, %vm212
          %214 = vst.msk [vmem:[%s185] sm:$0x3] %vm213, 0.0
        $region32: #{tpu_custom_call.1} parent=27 // pred_fallthru
          _
        %v215 = vld [vmem:[%s194] sm:$0xff]
        %v216 = vld [vmem:[%s194 + $0x8] sm:$0xff]
        %v217 = vld [vmem:[%s194 + $0x10] sm:$0xff]
        %v218 = vld [vmem:[%s194 + $0x18] sm:$0xff]
        %v219 = vld [vmem:[%s194 + $0x20] sm:$0x1]
        %v220 = vld [vmem:[%s194 + $0x28] sm:$0x1]
        %v221 = vld [vmem:[%s204] sm:$0xf]
        %v222 = vsub.f32 %v221, 0.001
        %v223 = vmul.f32 %v222, 8.0
        %v224 = vrcp.pop 0.4411691
        %v225 = vmul.f32 %v223, %v224
        %v226 = vadd.f32 %v225, 1.0
        %v227 = vrsqrt.pop %v226
        %v228 = vmul.f32 %v226, %v227
        %vm229 = vcmp.eq.f32.partialorder %v226, inf
        %v230 = vsel %vm229, %v226, %v228
        %vm231 = vcmp.eq.f32.partialorder %v226, 0.0
        %v232 = vand.u32 %v226, 2147483648
        %v233 = vsel %vm231, %v232, %v230
        %v234 = vmul.f32 %v233, 0.5
        %v235 = vadd.f32 %v234, -0.5
        %vm236 = vcmp.lt.f32.partialorder %v235, 0.0
        %vm237 = vcmp.gt.f32.partialorder %v235, 16.0
        %vm238 = vmor %vm236, %vm237
        %vm239 = vweird.f32 %v235
        %vm240 = vmor %vm238, %vm239
        %v241 = vsel %vm240, 16.0, %v235
        %v242 = vcvt.f32.s32.to.zero.pseudo %v241
        %vm243 = vcmask 1040384
        %v244 = vsel %vm243, %v219, -inf
        %v245 = vmax.f32 %v215, %v244
        %v246 = vmax.f32 %v245, %v217
        %v247 = vrot.slane %v246, 4
        %v248 = vmax.f32 %v246, %v247
        %v249 = vrot.slane %v248, 2
        %v250 = vmax.f32 %v248, %v249
        %v251 = vrot.slane %v250, 1
        %v252 = vmax.f32 %v250, %v251
        %v253 = vsel %vm243, %v220, -inf
        %v254 = vmax.f32 %v216, %v253
        %v255 = vmax.f32 %v254, %v218
        %v256 = vrot.slane %v255, 4
        %v257 = vmax.f32 %v255, %v256
        %v258 = vrot.slane %v257, 2
        %v259 = vmax.f32 %v257, %v258
        %v260 = vrot.slane %v259, 1
        %v261 = vmax.f32 %v259, %v260
        %v262 = vsub.f32 %v215, %v252
        %v263 = vsub.f32 %v216, %v261
        %v264 = vsub.f32 %v217, %v252
        %v265 = vsub.f32 %v218, %v261
        %v266 = vsub.f32 %v219, %v252
        %v267 = vsub.f32 %v220, %v261
        %v268 = vmul.f32 %v262, 1.442695
        %v269 = vpow.pop %v268
        %v270 = vmul.f32 %v263, 1.442695
        %v271 = vpow.pop %v270
        %v272 = vmul.f32 %v264, 1.442695
        %v273 = vpow.pop %v272
        %v274 = vmul.f32 %v265, 1.442695
        %v275 = vpow.pop %v274
        %v276 = vmul.f32 %v266, 1.442695
        %v277 = vpow.pop %v276
        %v278 = vmul.f32 %v267, 1.442695
        %v279 = vpow.pop %v278
        %v280 = vadd.f32 %v269, %v273
        %v281 = vsel %vm243, %v277, 0.0
        %v282 = vadd.f32 %v280, %v281
        %v283 = vrot.slane %v282, 4
        %v284 = vadd.f32 %v282, %v283
        %v285 = vrot.slane %v284, 2
        %v286 = vadd.f32 %v284, %v285
        %v287 = vrot.slane %v286, 1
        %v288 = vadd.f32 %v286, %v287
        %v289 = vadd.f32 %v271, %v275
        %v290 = vsel %vm243, %v279, 0.0
        %v291 = vadd.f32 %v289, %v290
        %v292 = vrot.slane %v291, 4
        %v293 = vadd.f32 %v291, %v292
        %v294 = vrot.slane %v293, 2
        %v295 = vadd.f32 %v293, %v294
        %v296 = vrot.slane %v295, 1
        %v297 = vadd.f32 %v295, %v296
        %v298 = vrcp.pop %v288
        %v299 = vrcp.pop %v297
        %v300 = vmul.f32 %v269, %v298
        %v301 = vmul.f32 %v271, %v299
        %v302 = vmul.f32 %v273, %v298
        %v303 = vmul.f32 %v275, %v299
        %v304 = vmul.f32 %v277, %v298
        %v305 = vmul.f32 %v279, %v299
        %v306 = vadd.f32 %v300, 1e-08
        %v307 = vadd.f32 %v301, 1e-08
        %v308 = vadd.f32 %v302, 1e-08
        %v309 = vadd.f32 %v303, 1e-08
        %v310 = vadd.f32 %v304, 1e-08
        %v311 = vadd.f32 %v305, 1e-08
        %v312 = vlog2.pop %v288
        %v313 = vmul.f32 %v312, 0.6931472
        %v314 = vlog2.pop %v297
        %v315 = vmul.f32 %v314, 0.6931472
        %v316 = vsub.f32 %v262, %v313
        %v317 = vsub.f32 %v263, %v315
        %v318 = vsub.f32 %v264, %v313
        %v319 = vsub.f32 %v265, %v315
        %v320 = vsub.f32 %v266, %v313
        %v321 = vsub.f32 %v267, %v315
        %v322 = vlaneseq
        %v323 = vshrl.u32 %v322, 7
        %v324 = vadd.s32 %v323, 8
        %v325 = vadd.s32 %v323, 16
        %v326 = vlaneseq
        %v327 = vshrl.u32 %v326, 7
        %v328 = vsub.s32 0, %v327
        %v329 = vrot.slane %v242, %v328
        %v330 = vlaneseq
        %v331 = vshrl.u32 %v330, 7
        %v332 = vsub.s32 2, %v331
        %v333 = vrot.slane %v242, %v332
        %v334 = vlaneseq
        %v335 = vshrl.u32 %v334, 7
        %v336 = vsub.s32 0, %v335
        %v337 = vrot.slane %v329, %v336
        %v338 = vlaneseq
        %v339 = vshrl.u32 %v338, 7
        %v340 = vsub.s32 0, %v339
        %v341 = vrot.slane %v333, %v340
        %vm342 = vcmp.eq.s32.totalorder %v323, %v337
        %vm343 = vcmp.eq.s32.totalorder %v323, %v341
        %vm344 = vcmp.eq.s32.totalorder %v324, %v337
        %vm345 = vcmp.eq.s32.totalorder %v324, %v341
        %vm346 = vcmp.eq.s32.totalorder %v325, %v337
        %vm347 = vcmp.eq.s32.totalorder %v325, %v341
        %v348 = vsel %vm342, 1, 0
        %v349 = vsel %vm343, 1, 0
        %v350 = vsel %vm344, 1, 0
        %v351 = vsel %vm345, 1, 0
        %v352 = vsel %vm346, 1, 0
        %v353 = vsel %vm347, 1, 0
        %v354 = vcvt.s32.f32 %v348
        %v355 = vcvt.s32.f32 %v349
        %v356 = vcvt.s32.f32 %v350
        %v357 = vcvt.s32.f32 %v351
        %v358 = vcvt.s32.f32 %v352
        %v359 = vcvt.s32.f32 %v353
        %v360 = vadd.f32 %v354, 1e-06
        %v361 = vadd.f32 %v355, 1e-06
        %v362 = vadd.f32 %v356, 1e-06
        %v363 = vadd.f32 %v357, 1e-06
        %v364 = vadd.f32 %v358, 1e-06
        %v365 = vadd.f32 %v359, 1e-06
        %v366 = vsub.f32 1.0, %v306
        %v367 = vsub.f32 1.0, %v307
        %v368 = vsub.f32 1.0, %v308
        %v369 = vsub.f32 1.0, %v309
        %v370 = vsub.f32 1.0, %v310
        %v371 = vsub.f32 1.0, %v311
        %v372 = vmul.f32 %v366, %v366
        %v373 = vmul.f32 %v367, %v367
        %v374 = vmul.f32 %v368, %v368
        %v375 = vmul.f32 %v369, %v369
        %v376 = vmul.f32 %v370, %v370
        %v377 = vmul.f32 %v371, %v371
        %v378 = vmul.f32 %v372, -0.25
        %v379 = vmul.f32 %v373, -0.25
        %v380 = vmul.f32 %v374, -0.25
        %v381 = vmul.f32 %v375, -0.25
        %v382 = vmul.f32 %v376, -0.25
        %v383 = vmul.f32 %v377, -0.25
        %v384 = vmul.f32 %v378, %v316
        %v385 = vmul.f32 %v379, %v317
        %v386 = vmul.f32 %v380, %v318
        %v387 = vmul.f32 %v381, %v319
        %v388 = vmul.f32 %v382, %v320
        %v389 = vmul.f32 %v383, %v321
        %v390 = vmul.f32 %v360, %v384
        %v391 = vmul.f32 %v361, %v385
        %v392 = vmul.f32 %v362, %v386
        %v393 = vmul.f32 %v363, %v387
        %v394 = vmul.f32 %v364, %v388
        %v395 = vmul.f32 %v365, %v389
        %v396 = vadd.f32 %v390, %v392
        %v397 = vsel %vm243, %v394, 0.0
        %v398 = vadd.f32 %v396, %v397
        %v399 = vrot.slane %v398, 4
        %v400 = vadd.f32 %v398, %v399
        %v401 = vrot.slane %v400, 2
        %v402 = vadd.f32 %v400, %v401
        %v403 = vrot.slane %v402, 1
        %v404 = vadd.f32 %v402, %v403
        %v405 = vadd.f32 %v391, %v393
        %v406 = vsel %vm243, %v395, 0.0
        %v407 = vadd.f32 %v405, %v406
        %v408 = vrot.slane %v407, 4
        %v409 = vadd.f32 %v407, %v408
        %v410 = vrot.slane %v409, 2
        %v411 = vadd.f32 %v409, %v410
        %v412 = vrot.slane %v411, 1
        %v413 = vadd.f32 %v411, %v412
        %s414 = smul.u32 %s21, 256
        %v415 = vlaneseq
        %v416 = vand.u32 %v415, 127
        %v417 = vadd.s32 %v416, 128
        %v418 = vstv %s414
        %v419 = vadd.s32 %v418, %v416
        %v420 = vadd.s32 %v418, %v417
        %v421 = vmul.f32 %v221, 12.0
        %v422 = vadd.f32 %v421, 1.0
        %vm423 = vcmp.lt.s32.totalorder %v419, 256
        %vm424 = vcmp.lt.s32.totalorder %v420, 256
        %v426 = vlaneseq
        %v427 = vshrl.u32 %v426, 7
        %v428 = vsub.s32 1, %v427
        %v429 = vrot.slane %v422, %v428
        %v430 = vlaneseq
        %v431 = vshrl.u32 %v430, 7
        %v432 = vsub.s32 3, %v431
        %v433 = vrot.slane %v422, %v432
        %v436 = vsel %vm423, %v429, 0.0
        %v437 = vsel %vm424, %v433, 0.0
        %v438 = vld [vmem:[%s185] sm:$0x3]
        %v439 = vmul.f32 %v404, %v436
        %v440 = vmul.f32 %v413, %v437
        %v443 = vcombine.low %v439, %v440
        %v445 = vunpack.c.l.s4 1966171168
        %v446 = vunpack.c.0.s8 %v445
        %v447 = vlaneseq
        %v448 = vshrl.u32 %v447, 7
        %v449 = vsub.s32 %v446, %v448
        %v450 = vrot.slane %v443, %v449
        %v452 = vunpack.c.l.s4 1966171168
        %v453 = vunpack.c.0.s8 %v452
        %v454 = vlaneseq
        %v455 = vshrl.u32 %v454, 7
        %v456 = vsub.s32 %v453, %v455
        %v457 = vrot.slane %v450, %v456
        %v459 = vadd.f32 %v438, %v457
        %v460 = vlaneseq
        %vm461 = vcmp.ge.s32.totalorder %v460, 0
        %vm462 = vcmp.lt.s32.totalorder %v460, 256
        %vm463 = vmand %vm461, %vm462
        %464 = vst.msk [vmem:[%s185] sm:$0x3] %vm463, %v459
        %s465 = sand.u32 %s92, 1
        %s466 = scalar_lea.sflag [#allocation3], %s465
        %s467 = sand.u32 %s92, 1
        %s468 = smul.addr %s467, 2
        %s469 = scalar_lea.vmem [#allocation2], %s468
        // Predicated region
        $region33: #{tpu_custom_call.1} parent=27 // pred_check
          %p470 = pneg %p102
        $region34: #{tpu_custom_call.1} parent=27 // pred_check_branch
          %472 = sbr.rel (%p470) target = $region36
        $region35: #{tpu_custom_call.1} parent=27 // pred_region
          %s474 = ssub.s32 32, 32
          %475 = vsyncadd %s466, %s474
          %s476 = smul.addr %s20, 2
          %s477 = smul.addr %s476, 16
          %s478 = scalar_lea.hbm %s2, %s477
          %s480 = sshll.u32 %s469, 4
          %s481 = int_to_ptr.vmem [resolvable:$true] %s480
          %483 = dma.vmem_to_hbm [thread:$0]  %s481, 32, %s478, %s466
        $region36: #{tpu_custom_call.1} parent=27 // pred_fallthru
          _
      $region28: #{tpu_custom_call.1} parent=5 // pred_fallthru
        _
      %p484 = scmp.le.s32.totalorder 2, %s11
      // Predicated region
      $region37: #{tpu_custom_call.1} parent=5 // pred_check
        %p485 = pneg %p484
      $region38: #{tpu_custom_call.1} parent=5 // pred_check_branch
        %487 = sbr.rel (%p485) target = $region40
      $region39: #{tpu_custom_call.1} parent=5 // pred_region
        %s488 = ssub.s32 %s11, 2
        // Predicated region
        $region41: #{tpu_custom_call.1} parent=39 // pred_check
          %p489 = pneg %p108
        $region42: #{tpu_custom_call.1} parent=39 // pred_check_branch
          %491 = sbr.rel (%p489) target = $region44
        $region43: #{tpu_custom_call.1} parent=39 // pred_region
          %s492 = sand.u32 %s93, 1
          %s493 = scalar_lea.sflag [#allocation3], %s492
          %s494 = sand.u32 %s93, 1
          %s495 = smul.addr %s494, 2
          %s496 = scalar_lea.vmem [#allocation2], %s495
          %497 = dma.done %s493, 32
        $region44: #{tpu_custom_call.1} parent=39 // pred_fallthru
          _
      $region40: #{tpu_custom_call.1} parent=5 // pred_fallthru
        _
    $region6: #{tpu_custom_call.1} parent=1 // loop_footer
      %s15 = sadd.s32 1, %s11
    $region7: #{tpu_custom_call.1} parent=1 // loop_footer_branch
      %10 = sbr.rel target = $region3
    $region8: #{tpu_custom_call.1} parent=1 // loop_exit
      _
    %498 = vsyncpa [#allocation3], 1
    %s499 = scalar_lea.sflag [#allocation3], 1
    %500 = vsyncpa %s499, 1

</llo_original>
